<compile_context>
chip_gen: v5e
topology: v5e:2x2
jax: 0.10.0
libtpu: 0.0.40
codegen_flags: <defaults>
</compile_context>

<pallas_src>
import functools

import jax
import jax.numpy as jnp
from jax import lax
from jax.experimental import pallas as pl
from jax.experimental.pallas import tpu as pltpu

_SELU_ALPHA = 1.6732632423543772
_SELU_SCALE = 1.0507009873554805
_EPS = 1e-5
_VMEM_LIMIT = 48 * 1024 * 1024   # fits v5e/v6e/v7x (v7x physical = 64 MiB)
_CHUNK = 32768                   # lane chunk of the flattened output per step


def _round_up(x, m):
    return ((x + m - 1) // m) * m


def _apply_act(x, act):
    if act == "relu":
        return jnp.maximum(x, 0.0)
    if act == "selu":
        return _SELU_SCALE * jnp.where(x > 0, x, _SELU_ALPHA * (jnp.exp(x) - 1.0))
    if act == "tanh":
        return jnp.tanh(x)
    return x


# ----------------------------------------------------------------------------
# fused conv + bias + InstanceNorm + activation kernel
# ----------------------------------------------------------------------------
def _fused_conv_kernel(*refs, taps, kw, Wp, chunks, act, do_norm, inv_count, eps):
    # refs: x (Cp, Px) flat padded input, w (taps, Cout, Cp), b (Cout, 1),
    #       [mask (1, P)], out (Cout, P)
    if do_norm:
        x_ref, w_ref, b_ref, m_ref, o_ref = refs
    else:
        x_ref, w_ref, b_ref, o_ref = refs

    bias = b_ref[...]                                      # (Cout, 1)

    # ---- convolution: one small matmul per tap, accumulated in VMEM ----
    for base, cw in chunks:
        acc = None
        for t in range(taps):
            ky, kx = divmod(t, kw)
            s = base + ky * Wp + kx                        # static lane offset
            rhs = x_ref[:, s:s + cw]                       # (Cp, cw)
            part = jnp.dot(w_ref[t], rhs, preferred_element_type=jnp.float32)
            acc = part if acc is None else acc + part
        acc = acc + bias
        if not do_norm:
            acc = _apply_act(acc, act)
        o_ref[:, base:base + cw] = acc                     # lane-dense store

    if do_norm:
        # ---- masked InstanceNorm statistics over valid output positions ----
        tot = None
        tot2 = None
        for base, cw in chunks:
            y = o_ref[:, base:base + cw]
            m = m_ref[:, base:base + cw]
            ym = y * m
            ps = jnp.sum(ym, axis=1, keepdims=True)
            pq = jnp.sum(ym * y, axis=1, keepdims=True)
            tot = ps if tot is None else tot + ps
            tot2 = pq if tot2 is None else tot2 + pq
        mean = tot * inv_count
        var = tot2 * inv_count - mean * mean
        inv = lax.rsqrt(jnp.maximum(var, 0.0) + eps)
        # ---- normalize + activation, in place ----
        for base, cw in chunks:
            y = (o_ref[:, base:base + cw] - mean) * inv
            o_ref[:, base:base + cw] = _apply_act(y, act)


def _fused_conv(xp, w, b, *, act, do_norm):
    """Stride-1 VALID conv on the already spatially padded input, fused with
    bias + InstanceNorm(affine=False) + activation.

    xp: (N, C, Hp, Wp) f32,  w: (Cout, C, kh, kw) f32,  b: (Cout,) f32
    returns (N, Cout, Ho, Wo) f32
    """
    N, C, Hp, Wp = xp.shape
    Cout, Cw, kh, kw = w.shape
    assert Cw == C
    Ho, Wo = Hp - kh + 1, Wp - kw + 1
    taps = kh * kw
    Cp = _round_up(C, 8)                       # pad contraction dim (review item)
    L = (Ho - 1) * Wp + Wo                     # last valid flat position + 1
    P = _round_up(Ho * Wp, 128)                # flat output length (stride = Wp)
    Px = _round_up((kh - 1) * Wp + (kw - 1) + P, 128)

    # flattened, channel- and tail-zero-padded input (single fused pad in XLA)
    xf = xp.reshape(N, C, Hp * Wp)
    xf = jnp.pad(xf, ((0, 0), (0, Cp - C), (0, Px - Hp * Wp)))

    # one (Cout, Cp) weight matrix per tap, bias as a column
    wt = jnp.transpose(w, (2, 3, 0, 1)).reshape(taps, Cout, C)
    wt = jnp.pad(wt, ((0, 0), (0, 0), (0, Cp - C)))
    bt = b.reshape(Cout, 1)

    chunks = []
    pos = 0
    while pos < P:
        chunks.append((pos, min(_CHUNK, P - pos)))
        pos += _CHUNK

    inputs = [xf, wt, bt]
    in_specs = [
        pl.BlockSpec((None, Cp, Px), lambda n: (n, 0, 0)),
        pl.BlockSpec((taps, Cout, Cp), lambda n: (0, 0, 0)),
        pl.BlockSpec((Cout, 1), lambda n: (0, 0)),
    ]
    if do_norm:
        idx = jnp.arange(P, dtype=jnp.int32)
        mask = (((idx % Wp) < Wo) & (idx < L)).astype(jnp.float32).reshape(1, P)
        inputs.append(mask)
        in_specs.append(pl.BlockSpec((1, P), lambda n: (0, 0)))

    kernel = functools.partial(
        _fused_conv_kernel, taps=taps, kw=kw, Wp=Wp, chunks=tuple(chunks),
        act=act, do_norm=do_norm, inv_count=1.0 / float(Ho * Wo), eps=_EPS)

    out = pl.pallas_call(
        kernel,
        out_shape=jax.ShapeDtypeStruct((N, Cout, P), jnp.float32),
        grid=(N,),
        in_specs=in_specs,
        out_specs=pl.BlockSpec((None, Cout, P), lambda n: (n, 0, 0)),
        compiler_params=pltpu.CompilerParams(
            dimension_semantics=("parallel",),
            vmem_limit_bytes=_VMEM_LIMIT),
    )(*inputs)

    # crop the padded-width rows back to dense NCHW; XLA fuses this with the
    # next layer's padding / residual add.
    return out[:, :, :Ho * Wp].reshape(N, Cout, Ho, Wp)[:, :, :, :Wo]


# ----------------------------------------------------------------------------
# layer wrappers (padding / space-to-depth / transposed-conv glue in XLA)
# ----------------------------------------------------------------------------
def _spatial_pad(x, pad, mode):
    if pad == 0:
        return x
    m = "reflect" if mode == "reflect" else "constant"
    return jnp.pad(x, ((0, 0), (0, 0), (pad, pad), (pad, pad)), mode=m)


def _space_to_depth(xp, w):
    """Rewrite a stride-2 kxk conv on xp as a stride-1 2x2 conv on the 4-phase
    space-to-depth rearrangement of xp (no strided matmuls, no zero MACs)."""
    N, C, Hp, Wp = xp.shape
    assert Hp % 2 == 0 and Wp % 2 == 0
    Cout, _, kh, kw = w.shape
    phases = [xp[:, :, py::2, px::2] for py in range(2) for px in range(2)]
    xin = jnp.concatenate(phases, axis=1)                   # (N, 4C, Hp/2, Wp/2)
    w2 = jnp.zeros((Cout, 4 * C, 2, 2), w.dtype)
    for py in range(2):
        for px in range(2):
            for dy in range(2):
                for dx in range(2):
                    ky, kx = 2 * dy + py, 2 * dx + px
                    if ky < kh and kx < kw:
                        w2 = w2.at[:, (2 * py + px) * C:(2 * py + px + 1) * C,
                                   dy, dx].set(w[:, :, ky, kx])
    return xin, w2


def conv_block(x, p, *, stride=1, padding=0, pad_mode="zero", act="none", norm=True):
    w, b = p["w"], p["b"]
    xp = _spatial_pad(x, padding, pad_mode)
    if stride == 1:
        return _fused_conv(xp, w, b, act=act, do_norm=norm)
    assert stride == 2
    xin, w2 = _space_to_depth(xp, w)
    return _fused_conv(xin, w2, b, act=act, do_norm=norm)


def conv_transpose_block(x, p, *, act="none", norm=True):
    # ConvTranspose2d(k=3, s=2, p=1, output_padding=1) == stride-1 conv of the
    # zero-dilated + padded input with the flipped / in-out-swapped kernel.
    # TODO(synk): 4-phase sub-pixel decomposition would skip the 75% zero taps.
    w, b = p["w"], p["b"]
    xd = lax.pad(x, jnp.array(0.0, x.dtype),
                 ((0, 0, 0), (0, 0, 0), (1, 2, 1), (1, 2, 1)))
    w_eq = jnp.transpose(jnp.flip(w, axis=(2, 3)), (1, 0, 2, 3))
    return _fused_conv(xd, w_eq, b, act=act, do_norm=norm)


def resnet_block(x, p):
    h = conv_block(x, {"w": p["w1"], "b": p["b1"]}, stride=1, padding=1,
                   pad_mode="reflect", act="relu", norm=True)
    h = conv_block(h, {"w": p["w2"], "b": p["b2"]}, stride=1, padding=1,
                   pad_mode="reflect", act="none", norm=True)
    return x + h   # residual add fuses with next layer's padding in XLA


# ----------------------------------------------------------------------------
# Linear (+ SELU) kernel: bf16 weight streaming in 512-lane tiles
# ----------------------------------------------------------------------------
def _linear_kernel(a_ref, w_ref, b_ref, o_ref, *, act):
    acc = jnp.dot(a_ref[...], w_ref[...], preferred_element_type=jnp.float32)
    acc = acc + b_ref[...]
    o_ref[...] = _apply_act(acc, act)


def linear_block(a, p, n_out, act):
    """a: (B, K) f32;  p['w']: (Kp, Np) bf16 pre-padded;  p['b']: (1, Np) f32."""
    w, b = p["w"], p["b"]
    B, K = a.shape
    Kp, Np = w.shape
    Bp = _round_up(B, 8)
    TN = 512
    a_p = jnp.pad(a, ((0, Bp - B), (0, Kp - K))).astype(jnp.bfloat16)
    out = pl.pallas_call(
        functools.partial(_linear_kernel, act=act),
        out_shape=jax.ShapeDtypeStruct((Bp, Np), jnp.float32),
        grid=(Np // TN,),
        in_specs=[
            pl.BlockSpec((Bp, Kp), lambda j: (0, 0)),
            pl.BlockSpec((Kp, TN), lambda j: (0, j)),
            pl.BlockSpec((1, TN), lambda j: (0, j)),
        ],
        out_specs=pl.BlockSpec((Bp, TN), lambda j: (0, j)),
        compiler_params=pltpu.CompilerParams(
            dimension_semantics=("parallel",),
            vmem_limit_bytes=_VMEM_LIMIT),
    )(a_p, w, b)
    return out[:B, :n_out]


# ----------------------------------------------------------------------------
# forward pass
# ----------------------------------------------------------------------------
def forward(params, x, label):
    B = label.shape[0]
    # --- L1: Linear(1000,2048)+SELU, Linear(2048,5625)+SELU (bf16 weights) ---
    w = linear_block(label, params["l1_0"], 2048, act="selu")
    w = linear_block(w, params["l1_1"], 5625, act="selu")
    w = w.reshape(B, 1, 75, 75)
    # --- L2 ---
    w = conv_block(w, params["l2_0"], stride=1, padding=1, act="selu")
    w = conv_block(w, params["l2_1"], stride=1, padding=1, act="selu")
    # --- En ---
    # TODO(synk): `.cuda()` in the PyTorch forward is device placement only.
    h = conv_block(x, params["en_conv0"], stride=1, padding=3,
                   pad_mode="reflect", act="selu")
    for i in range(2):
        for j in range(2):
            h = resnet_block(h, params[f"en_res_{i}_{j}"])
        h = conv_block(h, params[f"en_down_{i}"], stride=2, padding=1, act="selu")
    # --- bottleneck residual blocks ---
    for r in range(6):
        h = resnet_block(h, params[f"res_{r}"])
    # --- add the label-conditioned weight map ---
    h = h + w
    # --- Dn ---
    for i in range(2):
        h = conv_transpose_block(h, params[f"dn_up_{i}"], act="selu")
        for j in range(2):
            h = resnet_block(h, params[f"dn_res_{i}_{j}"])
    # ReflectionPad2d(3) + Conv(ngf, output_nc, k=8) + Tanh, fused (no norm)
    return conv_block(h, params["dn_final"], stride=1, padding=3,
                      pad_mode="reflect", act="tanh", norm=False)


# ----------------------------------------------------------------------------
# deterministic synthetic parameters
# ----------------------------------------------------------------------------
class _KeyGen:
    def __init__(self, key):
        self._key = key

    def __call__(self):
        self._key, k = jax.random.split(self._key)
        return k


def _conv_p(kg, cout, cin, k, scale=0.05):
    return {"w": scale * jax.random.normal(kg(), (cout, cin, k, k), jnp.float32),
            "b": scale * jax.random.normal(kg(), (cout,), jnp.float32)}


def _convT_p(kg, cin, cout, k, scale=0.05):
    return {"w": scale * jax.random.normal(kg(), (cin, cout, k, k), jnp.float32),
            "b": scale * jax.random.normal(kg(), (cout,), jnp.float32)}


def _linear_p(kg, din, dout, scale=0.02):
    Kp, Np = _round_up(din, 128), _round_up(dout, 512)
    w = scale * jax.random.normal(kg(), (din, dout), jnp.float32)
    b = scale * jax.random.normal(kg(), (dout,), jnp.float32)
    return {"w": jnp.pad(w, ((0, Kp - din), (0, Np - dout))).astype(jnp.bfloat16),
            "b": jnp.pad(b, (0, Np - dout)).reshape(1, Np)}


def _resblk_p(kg, dim):
    c1, c2 = _conv_p(kg, dim, dim, 3), _conv_p(kg, dim, dim, 3)
    return {"w1": c1["w"], "b1": c1["b"], "w2": c2["w"], "b2": c2["b"]}


def init_params(key, input_nc=3, output_nc=3, ngf=4):
    kg = _KeyGen(key)
    p = {}
    p["l1_0"] = _linear_p(kg, 1000, 2048)
    p["l1_1"] = _linear_p(kg, 2048, 5625)
    p["l2_0"] = _conv_p(kg, ngf, 1, 3)
    p["l2_1"] = _conv_p(kg, ngf * 4, ngf, 3)
    p["en_conv0"] = _conv_p(kg, ngf, input_nc, 7)
    for i in range(2):
        mult = 2 ** i
        for j in range(2):
            p[f"en_res_{i}_{j}"] = _resblk_p(kg, ngf * mult)
        p[f"en_down_{i}"] = _conv_p(kg, ngf * mult * 2, ngf * mult, 3)
    for r in range(6):
        p[f"res_{r}"] = _resblk_p(kg, ngf * 4)
    for i in range(2):
        mult = 2 ** (2 - i)
        p[f"dn_up_{i}"] = _convT_p(kg, ngf * mult, ngf * mult // 2, 3)
        for j in range(2):
            p[f"dn_res_{i}_{j}"] = _resblk_p(kg, ngf * mult // 2)
    p["dn_final"] = _conv_p(kg, output_nc, ngf, 8)
    return p


# ----------------------------------------------------------------------------
# small self-test of the fused kernels against lax references
# ----------------------------------------------------------------------------
def _self_test():
    ks = jax.random.split(jax.random.PRNGKey(7), 6)
    x = jax.random.normal(ks[0], (2, 3, 12, 12), jnp.float32)
    w = 0.3 * jax.random.normal(ks[1], (5, 3, 3, 3), jnp.float32)
    b = 0.3 * jax.random.normal(ks[2], (5,), jnp.float32)
    wt = 0.3 * jax.random.normal(ks[3], (3, 5, 3, 3), jnp.float32)
    w8 = 0.3 * jax.random.normal(ks[4], (2, 3, 8, 8), jnp.float32)
    b8 = 0.3 * jax.random.normal(ks[5], (2,), jnp.float32)

    def conv_ref(x, w, b, stride, pad, mode):
        xp = _spatial_pad(x, pad, mode)
        y = lax.conv_general_dilated(xp, w, (stride, stride), [(0, 0), (0, 0)],
                                     dimension_numbers=("NCHW", "OIHW", "NCHW"),
                                     precision=lax.Precision.HIGHEST)
        return y + b[None, :, None, None]

    def inorm(y):
        m = jnp.mean(y, axis=(2, 3), keepdims=True)
        v = jnp.mean((y - m) ** 2, axis=(2, 3), keepdims=True)
        return (y - m) * lax.rsqrt(v + _EPS)

    def check(got, ref, name):
        err = float(jnp.max(jnp.abs(got - ref)))
        assert err < 5e-2, f"{name}: max abs err {err}"

    got = conv_block(x, {"w": w, "b": b}, stride=1, padding=1,
                     pad_mode="reflect", act="relu", norm=True)
    check(got, jnp.maximum(inorm(conv_ref(x, w, b, 1, 1, "reflect")), 0.0),
          "conv3_reflect_in_relu")

    got = conv_block(x, {"w": w, "b": b}, stride=2, padding=1,
                     pad_mode="zero", act="selu", norm=True)
    check(got, jax.nn.selu(inorm(conv_ref(x, w, b, 2, 1, "zero"))),
          "conv3_stride2_in_selu")

    got = conv_transpose_block(x, {"w": wt, "b": b}, act="selu", norm=True)
    w_eq = jnp.transpose(jnp.flip(wt, axis=(2, 3)), (1, 0, 2, 3))
    ref = lax.conv_general_dilated(x, w_eq, (1, 1), [(1, 2), (1, 2)],
                                   lhs_dilation=(2, 2),
                                   dimension_numbers=("NCHW", "OIHW", "NCHW"),
                                   precision=lax.Precision.HIGHEST)
    ref = ref + b[None, :, None, None]
    check(got, jax.nn.selu(inorm(ref)), "convT_in_selu")

    got = conv_block(x, {"w": w8, "b": b8}, stride=1, padding=3,
                     pad_mode="reflect", act="tanh", norm=False)
    check(got, jnp.tanh(conv_ref(x, w8, b8, 1, 3, "reflect")), "conv8_tanh")


# ----------------------------------------------------------------------------
if __name__ == "__main__":
    _self_test()

    key = jax.random.PRNGKey(0)
    kp, kx, kl = jax.random.split(key, 3)

    INPUT_NC, OUTPUT_NC, NGF = 3, 3, 4
    B = 1
    # spatial must be 300: the module hard-codes Linear(...,5625)->view(B,1,75,75)
    # and adds it to En(input), which downsamples by 4.
    x = jax.random.normal(kx, (B, INPUT_NC, 300, 300), jnp.float32)
    label = jax.random.normal(kl, (B, 1000), jnp.float32)

    params = init_params(kp, INPUT_NC, OUTPUT_NC, NGF)

    fwd = jax.jit(forward)
    out = jax.block_until_ready(fwd(params, x, label))

    assert out.shape == (B, OUTPUT_NC, 299, 299), out.shape
    assert out.dtype == jnp.float32
    assert bool(jnp.all(jnp.isfinite(out)))
    assert bool(jnp.all(jnp.abs(out) <= 1.0))  # tanh output range
    print("KERNEL_OK")
</pallas_src>

<mosaic_0001>
module attributes {stable_mosaic.version = 11 : i64} {
  func.func @_fused_conv_kernel(%arg0: i32, %arg1: memref<1x8x384xf32, #tpu.memory_space<vmem>>, %arg2: memref<9x5x8xf32, #tpu.memory_space<vmem>>, %arg3: memref<5x1xf32, #tpu.memory_space<vmem>>, %arg4: memref<1x256xf32, #tpu.memory_space<vmem>>, %arg5: memref<1x5x256xf32, #tpu.memory_space<vmem>>) attributes {dimension_semantics = [#tpu.dimension_semantics<parallel>], iteration_bounds = array<i64: 2>, scalar_prefetch = 0 : i64, scratch_operands = 0 : i64, tpu.core_type = #tpu.core_type<tc>, window_params = [{transform_indices = @transform_0, window_bounds = array<i64: 1, 8, 384>}, {pipeline_mode = #tpu.pipeline_mode<synchronous>, transform_indices = @transform_1, window_bounds = array<i64: 9, 5, 8>}, {pipeline_mode = #tpu.pipeline_mode<synchronous>, transform_indices = @transform_2, window_bounds = array<i64: 5, 1>}, {pipeline_mode = #tpu.pipeline_mode<synchronous>, transform_indices = @transform_3, window_bounds = array<i64: 1, 256>}, {transform_indices = @transform_4, window_bounds = array<i64: 1, 5, 256>}]} {
    %c0 = arith.constant 0 : index
    %c0_0 = arith.constant 0 : index
    %0 = vector.load %arg3[%c0, %c0_0] : memref<5x1xf32, #tpu.memory_space<vmem>>, vector<5x1xf32>
    %c0_1 = arith.constant 0 : index
    %c0_2 = arith.constant 0 : index
    %c0_3 = arith.constant 0 : index
    %1 = vector.load %arg1[%c0_1, %c0_2, %c0_3] : memref<1x8x384xf32, #tpu.memory_space<vmem>>, vector<1x8x256xf32>
    %2 = vector.shape_cast %1 : vector<1x8x256xf32> to vector<8x256xf32>
    %c0_4 = arith.constant 0 : index
    %c0_5 = arith.constant 0 : index
    %c0_6 = arith.constant 0 : index
    %3 = vector.load %arg2[%c0_4, %c0_5, %c0_6] : memref<9x5x8xf32, #tpu.memory_space<vmem>>, vector<1x5x8xf32>
    %4 = vector.shape_cast %3 : vector<1x5x8xf32> to vector<5x8xf32>
    %cst = arith.constant dense<0.000000e+00> : vector<5x256xf32>
    %5 = tpu.matmul %4, %2, %cst {dimension_numbers = #tpu.dot_dimension_numbers<[1], [0], [0], [1], [0, 0, 1, 1], [], []>} : vector<5x8xf32>, vector<8x256xf32>, vector<5x256xf32> -> vector<5x256xf32>
    %c0_7 = arith.constant 0 : index
    %c0_8 = arith.constant 0 : index
    %c1 = arith.constant 1 : index
    %6 = vector.load %arg1[%c0_7, %c0_8, %c1] : memref<1x8x384xf32, #tpu.memory_space<vmem>>, vector<1x8x256xf32>
    %7 = vector.shape_cast %6 : vector<1x8x256xf32> to vector<8x256xf32>
    %c1_9 = arith.constant 1 : index
    %c0_10 = arith.constant 0 : index
    %c0_11 = arith.constant 0 : index
    %8 = vector.load %arg2[%c1_9, %c0_10, %c0_11] : memref<9x5x8xf32, #tpu.memory_space<vmem>>, vector<1x5x8xf32>
    %9 = vector.shape_cast %8 : vector<1x5x8xf32> to vector<5x8xf32>
    %cst_12 = arith.constant dense<0.000000e+00> : vector<5x256xf32>
    %10 = tpu.matmul %9, %7, %cst_12 {dimension_numbers = #tpu.dot_dimension_numbers<[1], [0], [0], [1], [0, 0, 1, 1], [], []>} : vector<5x8xf32>, vector<8x256xf32>, vector<5x256xf32> -> vector<5x256xf32>
    %11 = arith.addf %5, %10 : vector<5x256xf32>
    %c0_13 = arith.constant 0 : index
    %c0_14 = arith.constant 0 : index
    %c2 = arith.constant 2 : index
    %12 = vector.load %arg1[%c0_13, %c0_14, %c2] : memref<1x8x384xf32, #tpu.memory_space<vmem>>, vector<1x8x256xf32>
    %13 = vector.shape_cast %12 : vector<1x8x256xf32> to vector<8x256xf32>
    %c2_15 = arith.constant 2 : index
    %c0_16 = arith.constant 0 : index
    %c0_17 = arith.constant 0 : index
    %14 = vector.load %arg2[%c2_15, %c0_16, %c0_17] : memref<9x5x8xf32, #tpu.memory_space<vmem>>, vector<1x5x8xf32>
    %15 = vector.shape_cast %14 : vector<1x5x8xf32> to vector<5x8xf32>
    %cst_18 = arith.constant dense<0.000000e+00> : vector<5x256xf32>
    %16 = tpu.matmul %15, %13, %cst_18 {dimension_numbers = #tpu.dot_dimension_numbers<[1], [0], [0], [1], [0, 0, 1, 1], [], []>} : vector<5x8xf32>, vector<8x256xf32>, vector<5x256xf32> -> vector<5x256xf32>
    %17 = arith.addf %11, %16 : vector<5x256xf32>
    %c0_19 = arith.constant 0 : index
    %c0_20 = arith.constant 0 : index
    %c14 = arith.constant 14 : index
    %18 = vector.load %arg1[%c0_19, %c0_20, %c14] : memref<1x8x384xf32, #tpu.memory_space<vmem>>, vector<1x8x256xf32>
    %19 = vector.shape_cast %18 : vector<1x8x256xf32> to vector<8x256xf32>
    %c3 = arith.constant 3 : index
    %c0_21 = arith.constant 0 : index
    %c0_22 = arith.constant 0 : index
    %20 = vector.load %arg2[%c3, %c0_21, %c0_22] : memref<9x5x8xf32, #tpu.memory_space<vmem>>, vector<1x5x8xf32>
    %21 = vector.shape_cast %20 : vector<1x5x8xf32> to vector<5x8xf32>
    %cst_23 = arith.constant dense<0.000000e+00> : vector<5x256xf32>
    %22 = tpu.matmul %21, %19, %cst_23 {dimension_numbers = #tpu.dot_dimension_numbers<[1], [0], [0], [1], [0, 0, 1, 1], [], []>} : vector<5x8xf32>, vector<8x256xf32>, vector<5x256xf32> -> vector<5x256xf32>
    %23 = arith.addf %17, %22 : vector<5x256xf32>
    %c0_24 = arith.constant 0 : index
    %c0_25 = arith.constant 0 : index
    %c15 = arith.constant 15 : index
    %24 = vector.load %arg1[%c0_24, %c0_25, %c15] : memref<1x8x384xf32, #tpu.memory_space<vmem>>, vector<1x8x256xf32>
    %25 = vector.shape_cast %24 : vector<1x8x256xf32> to vector<8x256xf32>
    %c4 = arith.constant 4 : index
    %c0_26 = arith.constant 0 : index
    %c0_27 = arith.constant 0 : index
    %26 = vector.load %arg2[%c4, %c0_26, %c0_27] : memref<9x5x8xf32, #tpu.memory_space<vmem>>, vector<1x5x8xf32>
    %27 = vector.shape_cast %26 : vector<1x5x8xf32> to vector<5x8xf32>
    %cst_28 = arith.constant dense<0.000000e+00> : vector<5x256xf32>
    %28 = tpu.matmul %27, %25, %cst_28 {dimension_numbers = #tpu.dot_dimension_numbers<[1], [0], [0], [1], [0, 0, 1, 1], [], []>} : vector<5x8xf32>, vector<8x256xf32>, vector<5x256xf32> -> vector<5x256xf32>
    %29 = arith.addf %23, %28 : vector<5x256xf32>
    %c0_29 = arith.constant 0 : index
    %c0_30 = arith.constant 0 : index
    %c16 = arith.constant 16 : index
    %30 = vector.load %arg1[%c0_29, %c0_30, %c16] : memref<1x8x384xf32, #tpu.memory_space<vmem>>, vector<1x8x256xf32>
    %31 = vector.shape_cast %30 : vector<1x8x256xf32> to vector<8x256xf32>
    %c5 = arith.constant 5 : index
    %c0_31 = arith.constant 0 : index
    %c0_32 = arith.constant 0 : index
    %32 = vector.load %arg2[%c5, %c0_31, %c0_32] : memref<9x5x8xf32, #tpu.memory_space<vmem>>, vector<1x5x8xf32>
    %33 = vector.shape_cast %32 : vector<1x5x8xf32> to vector<5x8xf32>
    %cst_33 = arith.constant dense<0.000000e+00> : vector<5x256xf32>
    %34 = tpu.matmul %33, %31, %cst_33 {dimension_numbers = #tpu.dot_dimension_numbers<[1], [0], [0], [1], [0, 0, 1, 1], [], []>} : vector<5x8xf32>, vector<8x256xf32>, vector<5x256xf32> -> vector<5x256xf32>
    %35 = arith.addf %29, %34 : vector<5x256xf32>
    %c0_34 = arith.constant 0 : index
    %c0_35 = arith.constant 0 : index
    %c28 = arith.constant 28 : index
    %36 = vector.load %arg1[%c0_34, %c0_35, %c28] : memref<1x8x384xf32, #tpu.memory_space<vmem>>, vector<1x8x256xf32>
    %37 = vector.shape_cast %36 : vector<1x8x256xf32> to vector<8x256xf32>
    %c6 = arith.constant 6 : index
    %c0_36 = arith.constant 0 : index
    %c0_37 = arith.constant 0 : index
    %38 = vector.load %arg2[%c6, %c0_36, %c0_37] : memref<9x5x8xf32, #tpu.memory_space<vmem>>, vector<1x5x8xf32>
    %39 = vector.shape_cast %38 : vector<1x5x8xf32> to vector<5x8xf32>
    %cst_38 = arith.constant dense<0.000000e+00> : vector<5x256xf32>
    %40 = tpu.matmul %39, %37, %cst_38 {dimension_numbers = #tpu.dot_dimension_numbers<[1], [0], [0], [1], [0, 0, 1, 1], [], []>} : vector<5x8xf32>, vector<8x256xf32>, vector<5x256xf32> -> vector<5x256xf32>
    %41 = arith.addf %35, %40 : vector<5x256xf32>
    %c0_39 = arith.constant 0 : index
    %c0_40 = arith.constant 0 : index
    %c29 = arith.constant 29 : index
    %42 = vector.load %arg1[%c0_39, %c0_40, %c29] : memref<1x8x384xf32, #tpu.memory_space<vmem>>, vector<1x8x256xf32>
    %43 = vector.shape_cast %42 : vector<1x8x256xf32> to vector<8x256xf32>
    %c7 = arith.constant 7 : index
    %c0_41 = arith.constant 0 : index
    %c0_42 = arith.constant 0 : index
    %44 = vector.load %arg2[%c7, %c0_41, %c0_42] : memref<9x5x8xf32, #tpu.memory_space<vmem>>, vector<1x5x8xf32>
    %45 = vector.shape_cast %44 : vector<1x5x8xf32> to vector<5x8xf32>
    %cst_43 = arith.constant dense<0.000000e+00> : vector<5x256xf32>
    %46 = tpu.matmul %45, %43, %cst_43 {dimension_numbers = #tpu.dot_dimension_numbers<[1], [0], [0], [1], [0, 0, 1, 1], [], []>} : vector<5x8xf32>, vector<8x256xf32>, vector<5x256xf32> -> vector<5x256xf32>
    %47 = arith.addf %41, %46 : vector<5x256xf32>
    %c0_44 = arith.constant 0 : index
    %c0_45 = arith.constant 0 : index
    %c30 = arith.constant 30 : index
    %48 = vector.load %arg1[%c0_44, %c0_45, %c30] : memref<1x8x384xf32, #tpu.memory_space<vmem>>, vector<1x8x256xf32>
    %49 = vector.shape_cast %48 : vector<1x8x256xf32> to vector<8x256xf32>
    %c8 = arith.constant 8 : index
    %c0_46 = arith.constant 0 : index
    %c0_47 = arith.constant 0 : index
    %50 = vector.load %arg2[%c8, %c0_46, %c0_47] : memref<9x5x8xf32, #tpu.memory_space<vmem>>, vector<1x5x8xf32>
    %51 = vector.shape_cast %50 : vector<1x5x8xf32> to vector<5x8xf32>
    %cst_48 = arith.constant dense<0.000000e+00> : vector<5x256xf32>
    %52 = tpu.matmul %51, %49, %cst_48 {dimension_numbers = #tpu.dot_dimension_numbers<[1], [0], [0], [1], [0, 0, 1, 1], [], []>} : vector<5x8xf32>, vector<8x256xf32>, vector<5x256xf32> -> vector<5x256xf32>
    %53 = arith.addf %47, %52 : vector<5x256xf32>
    %54 = vector.broadcast %0 : vector<5x1xf32> to vector<5x256xf32>
    %55 = arith.addf %53, %54 : vector<5x256xf32>
    %c0_49 = arith.constant 0 : index
    %c0_50 = arith.constant 0 : index
    %c0_51 = arith.constant 0 : index
    %56 = vector.load %arg5[%c0_49, %c0_50, %c0_51] : memref<1x5x256xf32, #tpu.memory_space<vmem>>, vector<1x5x256xf32>
    %57 = vector.shape_cast %56 : vector<1x5x256xf32> to vector<5x256xf32>
    %58 = vector.shape_cast %55 : vector<5x256xf32> to vector<1x5x256xf32>
    tpu.vector_store %arg5[%c0_49, %c0_50, %c0_51], %58 {strides = array<i32>} : memref<1x5x256xf32, #tpu.memory_space<vmem>>, vector<1x5x256xf32>,
    %c0_52 = arith.constant 0 : index
    %c0_53 = arith.constant 0 : index
    %c0_54 = arith.constant 0 : index
    %59 = vector.load %arg5[%c0_52, %c0_53, %c0_54] : memref<1x5x256xf32, #tpu.memory_space<vmem>>, vector<1x5x256xf32>
    %60 = vector.shape_cast %59 : vector<1x5x256xf32> to vector<5x256xf32>
    %c0_55 = arith.constant 0 : index
    %c0_56 = arith.constant 0 : index
    %61 = vector.load %arg4[%c0_55, %c0_56] : memref<1x256xf32, #tpu.memory_space<vmem>>, vector<1x256xf32>
    %62 = vector.broadcast %61 : vector<1x256xf32> to vector<5x256xf32>
    %63 = arith.mulf %60, %62 : vector<5x256xf32>
    %cst_57 = arith.constant dense<0.000000e+00> : vector<5xf32>
    %64 = vector.multi_reduction <add>, %63, %cst_57 [1] : vector<5x256xf32> to vector<5xf32>
    %65 = vector.shape_cast %64 : vector<5xf32> to vector<5x1xf32>
    %66 = arith.mulf %63, %60 : vector<5x256xf32>
    %cst_58 = arith.constant dense<0.000000e+00> : vector<5xf32>
    %67 = vector.multi_reduction <add>, %66, %cst_58 [1] : vector<5x256xf32> to vector<5xf32>
    %68 = vector.shape_cast %67 : vector<5xf32> to vector<5x1xf32>
    %cst_59 = arith.constant 0.0069444445 : f32
    %69 = vector.broadcast %cst_59 : f32 to vector<5x1xf32>
    %70 = arith.mulf %65, %69 : vector<5x1xf32>
    %cst_60 = arith.constant 0.0069444445 : f32
    %71 = vector.broadcast %cst_60 : f32 to vector<5x1xf32>
    %72 = arith.mulf %68, %71 : vector<5x1xf32>
    %73 = arith.mulf %70, %70 : vector<5x1xf32>
    %74 = arith.subf %72, %73 : vector<5x1xf32>
    %cst_61 = arith.constant 0.000000e+00 : f32
    %75 = vector.broadcast %cst_61 : f32 to vector<5x1xf32>
    %76 = arith.maximumf %74, %75 : vector<5x1xf32>
    %cst_62 = arith.constant 9.99999974E-6 : f32
    %77 = vector.broadcast %cst_62 : f32 to vector<5x1xf32>
    %78 = arith.addf %76, %77 : vector<5x1xf32>
    %79 = math.rsqrt %78 : vector<5x1xf32>
    %c0_63 = arith.constant 0 : index
    %c0_64 = arith.constant 0 : index
    %c0_65 = arith.constant 0 : index
    %80 = vector.load %arg5[%c0_63, %c0_64, %c0_65] : memref<1x5x256xf32, #tpu.memory_space<vmem>>, vector<1x5x256xf32>
    %81 = vector.shape_cast %80 : vector<1x5x256xf32> to vector<5x256xf32>
    %82 = vector.broadcast %70 : vector<5x1xf32> to vector<5x256xf32>
    %83 = arith.subf %81, %82 : vector<5x256xf32>
    %84 = vector.broadcast %79 : vector<5x1xf32> to vector<5x256xf32>
    %85 = arith.mulf %83, %84 : vector<5x256xf32>
    %cst_66 = arith.constant 0.000000e+00 : f32
    %86 = vector.broadcast %cst_66 : f32 to vector<5x256xf32>
    %87 = arith.maximumf %85, %86 : vector<5x256xf32>
    %c0_67 = arith.constant 0 : index
    %c0_68 = arith.constant 0 : index
    %c0_69 = arith.constant 0 : index
    %88 = vector.load %arg5[%c0_67, %c0_68, %c0_69] : memref<1x5x256xf32, #tpu.memory_space<vmem>>, vector<1x5x256xf32>
    %89 = vector.shape_cast %88 : vector<1x5x256xf32> to vector<5x256xf32>
    %90 = vector.shape_cast %87 : vector<5x256xf32> to vector<1x5x256xf32>
    tpu.vector_store %arg5[%c0_67, %c0_68, %c0_69], %90 {strides = array<i32>} : memref<1x5x256xf32, #tpu.memory_space<vmem>>, vector<1x5x256xf32>,
    return
  }
  func.func @transform_0(%arg0: i32) -> (i32, i32, i32) {
    %c0_i32 = arith.constant 0 : i32
    %c0_i32_0 = arith.constant 0 : i32
    %c0_i32_1 = arith.constant 0 : i32
    return %arg0, %c0_i32, %c0_i32_0 : i32, i32, i32
  }
  func.func @transform_1(%arg0: i32) -> (i32, i32, i32) {
    %c0_i32 = arith.constant 0 : i32
    %c0_i32_0 = arith.constant 0 : i32
    %c0_i32_1 = arith.constant 0 : i32
    %c0_i32_2 = arith.constant 0 : i32
    return %c0_i32, %c0_i32_0, %c0_i32_1 : i32, i32, i32
  }
  func.func @transform_2(%arg0: i32) -> (i32, i32) {
    %c0_i32 = arith.constant 0 : i32
    %c0_i32_0 = arith.constant 0 : i32
    %c0_i32_1 = arith.constant 0 : i32
    return %c0_i32, %c0_i32_0 : i32, i32
  }
  func.func @transform_3(%arg0: i32) -> (i32, i32) {
    %c0_i32 = arith.constant 0 : i32
    %c0_i32_0 = arith.constant 0 : i32
    %c0_i32_1 = arith.constant 0 : i32
    return %c0_i32, %c0_i32_0 : i32, i32
  }
  func.func @transform_4(%arg0: i32) -> (i32, i32, i32) {
    %c0_i32 = arith.constant 0 : i32
    %c0_i32_0 = arith.constant 0 : i32
    %c0_i32_1 = arith.constant 0 : i32
    return %arg0, %c0_i32, %c0_i32_0 : i32, i32, i32
  }
}

</mosaic_0001>

<llo_original>
// kernel: tpu_custom_call.1
$region0: #{tpu_custom_call.1}
  #allocation0 [shape = 'u32[]', space=smem, size = 0x4, offset = 0x4, fixed_abs, tag = 'smem constant byte address 0x4 - core index']
  #allocation1 [shape = 'u32[72,128]{1,0:T(1,128)}', space=vmem, size = 0x9000, scoped, tag = 'internal scratch']
  %s0 = inlined_call_operand.vmem [shape: f32[2,8,384], index: 0, kind: input, shape index: {}]
  %s1 = inlined_call_operand.vmem [shape: f32[9,5,8], index: 1, kind: input, shape index: {}]
  %s2 = inlined_call_operand.vmem [shape: f32[5,1], index: 2, kind: input, shape index: {}]
  %s3 = inlined_call_operand.vmem [shape: f32[1,256], index: 3, kind: input, shape index: {}]
  %s4 = inlined_call_operand.vmem [shape: f32[2,5,256], index: 4, kind: output, shape index: {}]
  %s5 = sld [smem:[#allocation0]]
  $region49: #{tpu_custom_call.1} parent=0
    _
  %s7 = ssub.s32 1, %s5
  %s8 = scalar_select 0, %s7, %s5
  loop: start=0, step=1, limit=4
  $region2: #{tpu_custom_call.1} parent=0 // loop_pre_header
    _
  $region3: #{tpu_custom_call.1} parent=0 // loop_header
    %s10 = sphi 0, %s14
    %p11 = scmp.ge.s32.totalorder %s10, 4
    %s20 = sphi 0, %s22
    %s23 = sphi 0, %s20
    %s24 = sphi 0, %s23
    %s40 = sphi 0, %s24
    %s44 = sphi 0, %s44
    %s46 = sphi 0, %s44
    %s47 = sphi 0, %s46
    %s61 = sphi 0, %s47
    %s65 = sphi 0, %s65
    %s67 = sphi 0, %s65
    %s68 = sphi 0, %s67
    %s82 = sphi 0, %s68
    %s86 = sphi 0, %s86
    %s88 = sphi 0, %s86
    %s89 = sphi 0, %s88
    %s103 = sphi 0, %s89
    %s109 = sphi 0, %s111
    %s112 = sphi 0, %s109
    %s113 = sphi 0, %s112
    %s129 = sphi 0, %s113
  $region4: #{tpu_custom_call.1} parent=0 // loop_header_branch
    %13 = sbr.rel (%p11) target = $region8
  $region5: #{tpu_custom_call.1} parent=0 // loop_body
    %s15 = ssub.s32 %s10, 1
    %s16 = ssub.s32 %s10, 2
    %s17 = sadd.s32 %s10, 1
    %s18 = ssub.s32 %s10, %s17
    %p19 = scmp.eq.s32.totalorder %s18, 0
    %s21 = sadd.s32 %s20, 1
    %s22 = scalar_select %p19, %s20, %s21
    %p25 = pneg %p19
    %p26 = scmp.eq.s32.totalorder %s10, 1
    %p27 = por %p25, %p26
    %p28 = scmp.ne.s32.totalorder %s20, %s23
    %p29 = scmp.eq.s32.totalorder %s10, 0
    %p30 = por %p28, %p29
    %p31 = scmp.ne.s32.totalorder %s20, %s23
    %p32 = scmp.eq.s32.totalorder %s15, 1
    %p33 = por %p31, %p32
    %p34 = scmp.ne.s32.totalorder %s23, %s24
    %p35 = scmp.eq.s32.totalorder %s15, 0
    %p36 = por %p34, %p35
    %p37 = scmp.ne.s32.totalorder %s23, %s24
    %p38 = scmp.eq.s32.totalorder %s16, 1
    %p39 = por %p37, %p38
    %p41 = scmp.ne.s32.totalorder %s24, %s40
    %p42 = scmp.eq.s32.totalorder %s16, 0
    %p43 = por %p41, %p42
    %s45 = sadd.s32 %s44, 1
    %p48 = scmp.eq.s32.totalorder %s10, 1
    %p49 = scmp.ne.s32.totalorder %s44, %s46
    %p50 = scmp.eq.s32.totalorder %s10, 0
    %p51 = por %p49, %p50
    %p52 = scmp.ne.s32.totalorder %s44, %s46
    %p53 = scmp.eq.s32.totalorder %s15, 1
    %p54 = por %p52, %p53
    %p55 = scmp.ne.s32.totalorder %s46, %s47
    %p56 = scmp.eq.s32.totalorder %s15, 0
    %p57 = por %p55, %p56
    %p58 = scmp.ne.s32.totalorder %s46, %s47
    %p59 = scmp.eq.s32.totalorder %s16, 1
    %p60 = por %p58, %p59
    %p62 = scmp.ne.s32.totalorder %s47, %s61
    %p63 = scmp.eq.s32.totalorder %s16, 0
    %p64 = por %p62, %p63
    %s66 = sadd.s32 %s65, 1
    %p69 = scmp.eq.s32.totalorder %s10, 1
    %p70 = scmp.ne.s32.totalorder %s65, %s67
    %p71 = scmp.eq.s32.totalorder %s10, 0
    %p72 = por %p70, %p71
    %p73 = scmp.ne.s32.totalorder %s65, %s67
    %p74 = scmp.eq.s32.totalorder %s15, 1
    %p75 = por %p73, %p74
    %p76 = scmp.ne.s32.totalorder %s67, %s68
    %p77 = scmp.eq.s32.totalorder %s15, 0
    %p78 = por %p76, %p77
    %p79 = scmp.ne.s32.totalorder %s67, %s68
    %p80 = scmp.eq.s32.totalorder %s16, 1
    %p81 = por %p79, %p80
    %p83 = scmp.ne.s32.totalorder %s68, %s82
    %p84 = scmp.eq.s32.totalorder %s16, 0
    %p85 = por %p83, %p84
    %s87 = sadd.s32 %s86, 1
    %p90 = scmp.eq.s32.totalorder %s10, 1
    %p91 = scmp.ne.s32.totalorder %s86, %s88
    %p92 = scmp.eq.s32.totalorder %s10, 0
    %p93 = por %p91, %p92
    %p94 = scmp.ne.s32.totalorder %s86, %s88
    %p95 = scmp.eq.s32.totalorder %s15, 1
    %p96 = por %p94, %p95
    %p97 = scmp.ne.s32.totalorder %s88, %s89
    %p98 = scmp.eq.s32.totalorder %s15, 0
    %p99 = por %p97, %p98
    %p100 = scmp.ne.s32.totalorder %s88, %s89
    %p101 = scmp.eq.s32.totalorder %s16, 1
    %p102 = por %p100, %p101
    %p104 = scmp.ne.s32.totalorder %s89, %s103
    %p105 = scmp.eq.s32.totalorder %s16, 0
    %p106 = por %p104, %p105
    %s107 = ssub.s32 %s10, %s17
    %p108 = scmp.eq.s32.totalorder %s107, 0
    %s110 = sadd.s32 %s109, 1
    %s111 = scalar_select %p108, %s109, %s110
    %p114 = pneg %p108
    %p115 = scmp.eq.s32.totalorder %s10, 1
    %p116 = por %p114, %p115
    %p117 = scmp.ne.s32.totalorder %s109, %s112
    %p118 = scmp.eq.s32.totalorder %s10, 0
    %p119 = por %p117, %p118
    %p120 = scmp.ne.s32.totalorder %s109, %s112
    %p121 = scmp.eq.s32.totalorder %s15, 1
    %p122 = por %p120, %p121
    %p123 = scmp.ne.s32.totalorder %s112, %s113
    %p124 = scmp.eq.s32.totalorder %s15, 0
    %p125 = por %p123, %p124
    %p126 = scmp.ne.s32.totalorder %s112, %s113
    %p127 = scmp.eq.s32.totalorder %s16, 1
    %p128 = por %p126, %p127
    %p130 = scmp.ne.s32.totalorder %s113, %s129
    %p131 = scmp.eq.s32.totalorder %s16, 0
    %p132 = por %p130, %p131
    %p133 = scmp.le.s32.totalorder 1, %s10
    %p134 = scmp.lt.s32.totalorder %s10, 3
    %p135 = pnand %p133, %p134
    %p136 = pneg %p135
    // Predicated region
    $region9: #{tpu_custom_call.1} parent=5 // pred_check
      _
    $region10: #{tpu_custom_call.1} parent=5 // pred_check_branch
      %138 = sbr.rel (%p135) target = $region12
    $region11: #{tpu_custom_call.1} parent=5 // pred_region
      %s139 = ssub.s32 %s10, 1
      // Predicated region
      $region13: #{tpu_custom_call.1} parent=11 // pred_check
        %p140 = pneg %p57
      $region14: #{tpu_custom_call.1} parent=11 // pred_check_branch
        %142 = sbr.rel (%p140) target = $region16
      $region15: #{tpu_custom_call.1} parent=11 // pred_region
        _
      $region16: #{tpu_custom_call.1} parent=11 // pred_fallthru
        _
      // Predicated region
      $region17: #{tpu_custom_call.1} parent=11 // pred_check
        %p143 = pneg %p78
      $region18: #{tpu_custom_call.1} parent=11 // pred_check_branch
        %145 = sbr.rel (%p143) target = $region20
      $region19: #{tpu_custom_call.1} parent=11 // pred_region
        _
      $region20: #{tpu_custom_call.1} parent=11 // pred_fallthru
        _
      // Predicated region
      $region21: #{tpu_custom_call.1} parent=11 // pred_check
        %p146 = pneg %p99
      $region22: #{tpu_custom_call.1} parent=11 // pred_check_branch
        %148 = sbr.rel (%p146) target = $region24
      $region23: #{tpu_custom_call.1} parent=11 // pred_region
        _
      $region24: #{tpu_custom_call.1} parent=11 // pred_fallthru
        _
    $region12: #{tpu_custom_call.1} parent=5 // pred_fallthru
      _
    %p149 = scmp.lt.s32.totalorder %s10, 2
    // Predicated region
    $region25: #{tpu_custom_call.1} parent=5 // pred_check
      %p150 = pneg %p149
    $region26: #{tpu_custom_call.1} parent=5 // pred_check_branch
      %152 = sbr.rel (%p150) target = $region28
    $region27: #{tpu_custom_call.1} parent=5 // pred_region
      // Predicated region
      $region29: #{tpu_custom_call.1} parent=27 // pred_check
        %p153 = pneg %p30
      $region30: #{tpu_custom_call.1} parent=27 // pred_check_branch
        %155 = sbr.rel (%p153) target = $region32
      $region31: #{tpu_custom_call.1} parent=27 // pred_region
        %p156 = scmp.lt.s32.totalorder %s10, 1
        %s157 = scalar_select %p156, %s10, 1
        %s158 = smul.addr %s157, 3
        %s159 = smul.addr %s158, 8
        %s160 = scalar_lea.vmem %s0, %s159
      $region32: #{tpu_custom_call.1} parent=27 // pred_fallthru
        _
    $region28: #{tpu_custom_call.1} parent=5 // pred_fallthru
      _
    %p161 = scmp.le.s32.totalorder 1, %s10
    %p162 = scmp.lt.s32.totalorder %s10, 3
    %p163 = pnand %p161, %p162
    %p164 = pneg %p163
    // Predicated region
    $region33: #{tpu_custom_call.1} parent=5 // pred_check
      _
    $region34: #{tpu_custom_call.1} parent=5 // pred_check_branch
      %166 = sbr.rel (%p163) target = $region36
    $region35: #{tpu_custom_call.1} parent=5 // pred_region
      %s167 = ssub.s32 %s10, 1
      %p168 = scmp.lt.s32.totalorder %s15, 1
      %s169 = scalar_select %p168, %s15, 1
      %s170 = smul.addr %s169, 3
      %s171 = smul.addr %s170, 8
      %s172 = scalar_lea.vmem %s0, %s171
      %p173 = pneg %p36
      %p174 = pneg %p33
      %p175 = pneg %p57
      %p176 = pneg %p54
      %p177 = pneg %p78
      %p178 = pneg %p75
      %p179 = pneg %p99
      %p180 = pneg %p96
      %p181 = pneg %p125
      %p182 = pneg %p122
      %p183 = scmp.lt.s32.totalorder %s15, 1
      %s184 = scalar_select %p183, %s15, 1
      %s185 = smul.addr %s184, 2
      %s186 = smul.addr %s185, 8
      %s187 = scalar_lea.vmem %s4, %s186
      %p188 = scmp.lt.s32.totalorder %s15, 1
      %s189 = scalar_select %p188, %s15, 1
      %s190 = smul.addr %s189, 3
      %s191 = smul.addr %s190, 8
      %s192 = scalar_lea.vmem %s0, %s191
      %p193 = scmp.lt.s32.totalorder %s15, 1
      %s194 = scalar_select %p193, %s15, 1
      %s195 = smul.addr %s194, 2
      %s196 = smul.addr %s195, 8
      %s197 = scalar_lea.vmem %s4, %s196
      %v198 = vld [vmem:[%s2] sm:$0x1f]
      %v199 = vld [vmem:[%s192] sm:$0xff]
      %v200 = vld [vmem:[%s192 + $0x8] sm:$0xff]
      %v201 = vld [vmem:[%s1] sm:$0x1f]
      %v202 = vld [vmem:[%s192] sm:$0xff]
      %v203 = vld [vmem:[%s192 + $0x8] sm:$0xff]
      %v204 = vld [vmem:[%s192 + $0x10] sm:$0xff]
      %s205 = scalar_lea.vmem %s1, 8
      %v206 = vld [vmem:[%s205] sm:$0x1f]
      %210 = vrot.lane.b32.xlu0 %v202, 127
      %v211 = vpop.permute.xlu0 %210
      %212 = vrot.lane.b32.xlu0 %v203, 127
      %v213 = vpop.permute.xlu0 %212
      %214 = vrot.lane.b32.xlu0 %v204, 127
      %v215 = vpop.permute.xlu0 %214
      %vm216 = vcmask 1039360
      %v217 = vsel %vm216, %v211, %v213
      %v218 = vsel %vm216, %v213, %v215
      %vm221 = vcmask 64512
      %v223 = vsel %vm221, %v206, 0
      %225 = vmatpush.msra.mxu0 0.0
      %226 = vmatpush.msra.mxu0 0.0
      %227 = vmatpush.msra.mxu0 0.0
      %228 = vmatpush.msra.mxu0 0.0
      %229 = vmatpush.msra.mxu0 0.0
      %230 = vmatpush.msra.mxu0 0.0
      %231 = vmatpush.msra.mxu0 0.0
      %232 = vmatpush.msra.mxu0 0.0
      %233 = vmatpush.msra.mxu0 0.0
      %234 = vmatpush.msra.mxu0 0.0
      %235 = vmatpush.msra.mxu0 0.0
      %236 = vmatpush.msra.mxu0 0.0
      %237 = vmatpush.msra.mxu0 0.0
      %238 = vmatpush.msra.mxu0 0.0
      %239 = vmatpush.msra.mxu0 0.0
      %240 = vmatpush.msra.mxu0 %v217
      %241 = vmatmul.f32.gmra.mxu0 %v223
      %v242 = vpop.f32.mrf.mxu0
      %v243 = vadd.f32 0.0, %v242
      %244 = vdwg.mxu0
      %245 = vmatpush.msra.mxu0 0.0
      %246 = vmatpush.msra.mxu0 0.0
      %247 = vmatpush.msra.mxu0 0.0
      %248 = vmatpush.msra.mxu0 0.0
      %249 = vmatpush.msra.mxu0 0.0
      %250 = vmatpush.msra.mxu0 0.0
      %251 = vmatpush.msra.mxu0 0.0
      %252 = vmatpush.msra.mxu0 0.0
      %253 = vmatpush.msra.mxu0 0.0
      %254 = vmatpush.msra.mxu0 0.0
      %255 = vmatpush.msra.mxu0 0.0
      %256 = vmatpush.msra.mxu0 0.0
      %257 = vmatpush.msra.mxu0 0.0
      %258 = vmatpush.msra.mxu0 0.0
      %259 = vmatpush.msra.mxu0 0.0
      %260 = vmatpush.msra.mxu0 %v218
      %261 = vmatmul.f32.gmra.mxu0 %v223
      %v262 = vpop.f32.mrf.mxu0
      %v263 = vadd.f32 0.0, %v262
      %264 = vdwg.mxu0
      %v266 = vsel %vm221, %v201, 0
      %268 = vmatpush.msra.mxu0 0.0
      %269 = vmatpush.msra.mxu0 0.0
      %270 = vmatpush.msra.mxu0 0.0
      %271 = vmatpush.msra.mxu0 0.0
      %272 = vmatpush.msra.mxu0 0.0
      %273 = vmatpush.msra.mxu0 0.0
      %274 = vmatpush.msra.mxu0 0.0
      %275 = vmatpush.msra.mxu0 0.0
      %276 = vmatpush.msra.mxu0 0.0
      %277 = vmatpush.msra.mxu0 0.0
      %278 = vmatpush.msra.mxu0 0.0
      %279 = vmatpush.msra.mxu0 0.0
      %280 = vmatpush.msra.mxu0 0.0
      %281 = vmatpush.msra.mxu0 0.0
      %282 = vmatpush.msra.mxu0 0.0
      %283 = vmatpush.msra.mxu0 %v199
      %284 = vmatmul.f32.gmra.mxu0 %v266
      %v285 = vpop.f32.mrf.mxu0
      %v286 = vadd.f32 %v243, %v285
      %287 = vdwg.mxu0
      %288 = vmatpush.msra.mxu0 0.0
      %289 = vmatpush.msra.mxu0 0.0
      %290 = vmatpush.msra.mxu0 0.0
      %291 = vmatpush.msra.mxu0 0.0
      %292 = vmatpush.msra.mxu0 0.0
      %293 = vmatpush.msra.mxu0 0.0
      %294 = vmatpush.msra.mxu0 0.0
      %295 = vmatpush.msra.mxu0 0.0
      %296 = vmatpush.msra.mxu0 0.0
      %297 = vmatpush.msra.mxu0 0.0
      %298 = vmatpush.msra.mxu0 0.0
      %299 = vmatpush.msra.mxu0 0.0
      %300 = vmatpush.msra.mxu0 0.0
      %301 = vmatpush.msra.mxu0 0.0
      %302 = vmatpush.msra.mxu0 0.0
      %303 = vmatpush.msra.mxu0 %v200
      %304 = vmatmul.f32.gmra.mxu0 %v266
      %v305 = vpop.f32.mrf.mxu0
      %v306 = vadd.f32 %v263, %v305
      %307 = vdwg.mxu0
      %s308 = scalar_lea.vmem %s1, 16
      %v309 = vld [vmem:[%s308] sm:$0x1f]
      %310 = vrot.lane.b32.xlu0 %v202, 126
      %v311 = vpop.permute.xlu0 %310
      %312 = vrot.lane.b32.xlu0 %v203, 126
      %v313 = vpop.permute.xlu0 %312
      %314 = vrot.lane.b32.xlu0 %v204, 126
      %v315 = vpop.permute.xlu0 %314
      %vm316 = vcmask 1031168
      %v317 = vsel %vm316, %v311, %v313
      %v318 = vsel %vm316, %v313, %v315
      %v322 = vsel %vm221, %v309, 0
      %324 = vmatpush.msra.mxu0 0.0
      %325 = vmatpush.msra.mxu0 0.0
      %326 = vmatpush.msra.mxu0 0.0
      %327 = vmatpush.msra.mxu0 0.0
      %328 = vmatpush.msra.mxu0 0.0
      %329 = vmatpush.msra.mxu0 0.0
      %330 = vmatpush.msra.mxu0 0.0
      %331 = vmatpush.msra.mxu0 0.0
      %332 = vmatpush.msra.mxu0 0.0
      %333 = vmatpush.msra.mxu0 0.0
      %334 = vmatpush.msra.mxu0 0.0
      %335 = vmatpush.msra.mxu0 0.0
      %336 = vmatpush.msra.mxu0 0.0
      %337 = vmatpush.msra.mxu0 0.0
      %338 = vmatpush.msra.mxu0 0.0
      %339 = vmatpush.msra.mxu0 %v317
      %340 = vmatmul.f32.gmra.mxu0 %v322
      %v341 = vpop.f32.mrf.mxu0
      %v342 = vadd.f32 0.0, %v341
      %343 = vdwg.mxu0
      %344 = vmatpush.msra.mxu0 0.0
      %345 = vmatpush.msra.mxu0 0.0
      %346 = vmatpush.msra.mxu0 0.0
      %347 = vmatpush.msra.mxu0 0.0
      %348 = vmatpush.msra.mxu0 0.0
      %349 = vmatpush.msra.mxu0 0.0
      %350 = vmatpush.msra.mxu0 0.0
      %351 = vmatpush.msra.mxu0 0.0
      %352 = vmatpush.msra.mxu0 0.0
      %353 = vmatpush.msra.mxu0 0.0
      %354 = vmatpush.msra.mxu0 0.0
      %355 = vmatpush.msra.mxu0 0.0
      %356 = vmatpush.msra.mxu0 0.0
      %357 = vmatpush.msra.mxu0 0.0
      %358 = vmatpush.msra.mxu0 0.0
      %359 = vmatpush.msra.mxu0 %v318
      %360 = vmatmul.f32.gmra.mxu0 %v322
      %v361 = vpop.f32.mrf.mxu0
      %v362 = vadd.f32 0.0, %v361
      %363 = vdwg.mxu0
      %v364 = vadd.f32 %v286, %v342
      %v365 = vadd.f32 %v306, %v362
      %s366 = scalar_lea.vmem %s1, 24
      %v367 = vld [vmem:[%s366] sm:$0x1f]
      %368 = vrot.lane.b32.xlu0 %v202, 114
      %v369 = vpop.permute.xlu0 %368
      %370 = vrot.lane.b32.xlu0 %v203, 114
      %v371 = vpop.permute.xlu0 %370
      %372 = vrot.lane.b32.xlu0 %v204, 114
      %v373 = vpop.permute.xlu0 %372
      %vm374 = vcmask 932864
      %v375 = vsel %vm374, %v369, %v371
      %v376 = vsel %vm374, %v371, %v373
      %v380 = vsel %vm221, %v367, 0
      %382 = vmatpush.msra.mxu0 0.0
      %383 = vmatpush.msra.mxu0 0.0
      %384 = vmatpush.msra.mxu0 0.0
      %385 = vmatpush.msra.mxu0 0.0
      %386 = vmatpush.msra.mxu0 0.0
      %387 = vmatpush.msra.mxu0 0.0
      %388 = vmatpush.msra.mxu0 0.0
      %389 = vmatpush.msra.mxu0 0.0
      %390 = vmatpush.msra.mxu0 0.0
      %391 = vmatpush.msra.mxu0 0.0
      %392 = vmatpush.msra.mxu0 0.0
      %393 = vmatpush.msra.mxu0 0.0
      %394 = vmatpush.msra.mxu0 0.0
      %395 = vmatpush.msra.mxu0 0.0
      %396 = vmatpush.msra.mxu0 0.0
      %397 = vmatpush.msra.mxu0 %v375
      %398 = vmatmul.f32.gmra.mxu0 %v380
      %v399 = vpop.f32.mrf.mxu0
      %v400 = vadd.f32 0.0, %v399
      %401 = vdwg.mxu0
      %402 = vmatpush.msra.mxu0 0.0
      %403 = vmatpush.msra.mxu0 0.0
      %404 = vmatpush.msra.mxu0 0.0
      %405 = vmatpush.msra.mxu0 0.0
      %406 = vmatpush.msra.mxu0 0.0
      %407 = vmatpush.msra.mxu0 0.0
      %408 = vmatpush.msra.mxu0 0.0
      %409 = vmatpush.msra.mxu0 0.0
      %410 = vmatpush.msra.mxu0 0.0
      %411 = vmatpush.msra.mxu0 0.0
      %412 = vmatpush.msra.mxu0 0.0
      %413 = vmatpush.msra.mxu0 0.0
      %414 = vmatpush.msra.mxu0 0.0
      %415 = vmatpush.msra.mxu0 0.0
      %416 = vmatpush.msra.mxu0 0.0
      %417 = vmatpush.msra.mxu0 %v376
      %418 = vmatmul.f32.gmra.mxu0 %v380
      %v419 = vpop.f32.mrf.mxu0
      %v420 = vadd.f32 0.0, %v419
      %421 = vdwg.mxu0
      %v422 = vadd.f32 %v364, %v400
      %v423 = vadd.f32 %v365, %v420
      %s424 = scalar_lea.vmem %s1, 32
      %v425 = vld [vmem:[%s424] sm:$0x1f]
      %426 = vrot.lane.b32.xlu0 %v202, 113
      %v427 = vpop.permute.xlu0 %426
      %428 = vrot.lane.b32.xlu0 %v203, 113
      %v429 = vpop.permute.xlu0 %428
      %430 = vrot.lane.b32.xlu0 %v204, 113
      %v431 = vpop.permute.xlu0 %430
      %vm432 = vcmask 924672
      %v433 = vsel %vm432, %v427, %v429
      %v434 = vsel %vm432, %v429, %v431
      %v438 = vsel %vm221, %v425, 0
      %440 = vmatpush.msra.mxu0 0.0
      %441 = vmatpush.msra.mxu0 0.0
      %442 = vmatpush.msra.mxu0 0.0
      %443 = vmatpush.msra.mxu0 0.0
      %444 = vmatpush.msra.mxu0 0.0
      %445 = vmatpush.msra.mxu0 0.0
      %446 = vmatpush.msra.mxu0 0.0
      %447 = vmatpush.msra.mxu0 0.0
      %448 = vmatpush.msra.mxu0 0.0
      %449 = vmatpush.msra.mxu0 0.0
      %450 = vmatpush.msra.mxu0 0.0
      %451 = vmatpush.msra.mxu0 0.0
      %452 = vmatpush.msra.mxu0 0.0
      %453 = vmatpush.msra.mxu0 0.0
      %454 = vmatpush.msra.mxu0 0.0
      %455 = vmatpush.msra.mxu0 %v433
      %456 = vmatmul.f32.gmra.mxu0 %v438
      %v457 = vpop.f32.mrf.mxu0
      %v458 = vadd.f32 0.0, %v457
      %459 = vdwg.mxu0
      %460 = vmatpush.msra.mxu0 0.0
      %461 = vmatpush.msra.mxu0 0.0
      %462 = vmatpush.msra.mxu0 0.0
      %463 = vmatpush.msra.mxu0 0.0
      %464 = vmatpush.msra.mxu0 0.0
      %465 = vmatpush.msra.mxu0 0.0
      %466 = vmatpush.msra.mxu0 0.0
      %467 = vmatpush.msra.mxu0 0.0
      %468 = vmatpush.msra.mxu0 0.0
      %469 = vmatpush.msra.mxu0 0.0
      %470 = vmatpush.msra.mxu0 0.0
      %471 = vmatpush.msra.mxu0 0.0
      %472 = vmatpush.msra.mxu0 0.0
      %473 = vmatpush.msra.mxu0 0.0
      %474 = vmatpush.msra.mxu0 0.0
      %475 = vmatpush.msra.mxu0 %v434
      %476 = vmatmul.f32.gmra.mxu0 %v438
      %v477 = vpop.f32.mrf.mxu0
      %v478 = vadd.f32 0.0, %v477
      %479 = vdwg.mxu0
      %v480 = vadd.f32 %v422, %v458
      %v481 = vadd.f32 %v423, %v478
      %s482 = scalar_lea.vmem %s1, 40
      %v483 = vld [vmem:[%s482] sm:$0x1f]
      %484 = vrot.lane.b32.xlu0 %v202, 112
      %v485 = vpop.permute.xlu0 %484
      %486 = vrot.lane.b32.xlu0 %v203, 112
      %v487 = vpop.permute.xlu0 %486
      %488 = vrot.lane.b32.xlu0 %v204, 112
      %v489 = vpop.permute.xlu0 %488
      %vm490 = vcmask 916480
      %v491 = vsel %vm490, %v485, %v487
      %v492 = vsel %vm490, %v487, %v489
      %v496 = vsel %vm221, %v483, 0
      %498 = vmatpush.msra.mxu0 0.0
      %499 = vmatpush.msra.mxu0 0.0
      %500 = vmatpush.msra.mxu0 0.0
      %501 = vmatpush.msra.mxu0 0.0
      %502 = vmatpush.msra.mxu0 0.0
      %503 = vmatpush.msra.mxu0 0.0
      %504 = vmatpush.msra.mxu0 0.0
      %505 = vmatpush.msra.mxu0 0.0
      %506 = vmatpush.msra.mxu0 0.0
      %507 = vmatpush.msra.mxu0 0.0
      %508 = vmatpush.msra.mxu0 0.0
      %509 = vmatpush.msra.mxu0 0.0
      %510 = vmatpush.msra.mxu0 0.0
      %511 = vmatpush.msra.mxu0 0.0
      %512 = vmatpush.msra.mxu0 0.0
      %513 = vmatpush.msra.mxu0 %v491
      %514 = vmatmul.f32.gmra.mxu0 %v496
      %v515 = vpop.f32.mrf.mxu0
      %v516 = vadd.f32 0.0, %v515
      %517 = vdwg.mxu0
      %518 = vmatpush.msra.mxu0 0.0
      %519 = vmatpush.msra.mxu0 0.0
      %520 = vmatpush.msra.mxu0 0.0
      %521 = vmatpush.msra.mxu0 0.0
      %522 = vmatpush.msra.mxu0 0.0
      %523 = vmatpush.msra.mxu0 0.0
      %524 = vmatpush.msra.mxu0 0.0
      %525 = vmatpush.msra.mxu0 0.0
      %526 = vmatpush.msra.mxu0 0.0
      %527 = vmatpush.msra.mxu0 0.0
      %528 = vmatpush.msra.mxu0 0.0
      %529 = vmatpush.msra.mxu0 0.0
      %530 = vmatpush.msra.mxu0 0.0
      %531 = vmatpush.msra.mxu0 0.0
      %532 = vmatpush.msra.mxu0 0.0
      %533 = vmatpush.msra.mxu0 %v492
      %534 = vmatmul.f32.gmra.mxu0 %v496
      %v535 = vpop.f32.mrf.mxu0
      %v536 = vadd.f32 0.0, %v535
      %537 = vdwg.mxu0
      %v538 = vadd.f32 %v480, %v516
      %v539 = vadd.f32 %v481, %v536
      %s540 = scalar_lea.vmem %s1, 48
      %v541 = vld [vmem:[%s540] sm:$0x1f]
      %542 = vrot.lane.b32.xlu0 %v202, 100
      %v543 = vpop.permute.xlu0 %542
      %544 = vrot.lane.b32.xlu0 %v203, 100
      %v545 = vpop.permute.xlu0 %544
      %546 = vrot.lane.b32.xlu0 %v204, 100
      %v547 = vpop.permute.xlu0 %546
      %vm548 = vcmask 818176
      %v549 = vsel %vm548, %v543, %v545
      %v550 = vsel %vm548, %v545, %v547
      %v554 = vsel %vm221, %v541, 0
      %556 = vmatpush.msra.mxu0 0.0
      %557 = vmatpush.msra.mxu0 0.0
      %558 = vmatpush.msra.mxu0 0.0
      %559 = vmatpush.msra.mxu0 0.0
      %560 = vmatpush.msra.mxu0 0.0
      %561 = vmatpush.msra.mxu0 0.0
      %562 = vmatpush.msra.mxu0 0.0
      %563 = vmatpush.msra.mxu0 0.0
      %564 = vmatpush.msra.mxu0 0.0
      %565 = vmatpush.msra.mxu0 0.0
      %566 = vmatpush.msra.mxu0 0.0
      %567 = vmatpush.msra.mxu0 0.0
      %568 = vmatpush.msra.mxu0 0.0
      %569 = vmatpush.msra.mxu0 0.0
      %570 = vmatpush.msra.mxu0 0.0
      %571 = vmatpush.msra.mxu0 %v549
      %572 = vmatmul.f32.gmra.mxu0 %v554
      %v573 = vpop.f32.mrf.mxu0
      %v574 = vadd.f32 0.0, %v573
      %575 = vdwg.mxu0
      %576 = vmatpush.msra.mxu0 0.0
      %577 = vmatpush.msra.mxu0 0.0
      %578 = vmatpush.msra.mxu0 0.0
      %579 = vmatpush.msra.mxu0 0.0
      %580 = vmatpush.msra.mxu0 0.0
      %581 = vmatpush.msra.mxu0 0.0
      %582 = vmatpush.msra.mxu0 0.0
      %583 = vmatpush.msra.mxu0 0.0
      %584 = vmatpush.msra.mxu0 0.0
      %585 = vmatpush.msra.mxu0 0.0
      %586 = vmatpush.msra.mxu0 0.0
      %587 = vmatpush.msra.mxu0 0.0
      %588 = vmatpush.msra.mxu0 0.0
      %589 = vmatpush.msra.mxu0 0.0
      %590 = vmatpush.msra.mxu0 0.0
      %591 = vmatpush.msra.mxu0 %v550
      %592 = vmatmul.f32.gmra.mxu0 %v554
      %v593 = vpop.f32.mrf.mxu0
      %v594 = vadd.f32 0.0, %v593
      %595 = vdwg.mxu0
      %v596 = vadd.f32 %v538, %v574
      %v597 = vadd.f32 %v539, %v594
      %s598 = scalar_lea.vmem %s1, 56
      %v599 = vld [vmem:[%s598] sm:$0x1f]
      %600 = vrot.lane.b32.xlu0 %v202, 99
      %v601 = vpop.permute.xlu0 %600
      %602 = vrot.lane.b32.xlu0 %v203, 99
      %v603 = vpop.permute.xlu0 %602
      %604 = vrot.lane.b32.xlu0 %v204, 99
      %v605 = vpop.permute.xlu0 %604
      %vm606 = vcmask 809984
      %v607 = vsel %vm606, %v601, %v603
      %v608 = vsel %vm606, %v603, %v605
      %v612 = vsel %vm221, %v599, 0
      %614 = vmatpush.msra.mxu0 0.0
      %615 = vmatpush.msra.mxu0 0.0
      %616 = vmatpush.msra.mxu0 0.0
      %617 = vmatpush.msra.mxu0 0.0
      %618 = vmatpush.msra.mxu0 0.0
      %619 = vmatpush.msra.mxu0 0.0
      %620 = vmatpush.msra.mxu0 0.0
      %621 = vmatpush.msra.mxu0 0.0
      %622 = vmatpush.msra.mxu0 0.0
      %623 = vmatpush.msra.mxu0 0.0
      %624 = vmatpush.msra.mxu0 0.0
      %625 = vmatpush.msra.mxu0 0.0
      %626 = vmatpush.msra.mxu0 0.0
      %627 = vmatpush.msra.mxu0 0.0
      %628 = vmatpush.msra.mxu0 0.0
      %629 = vmatpush.msra.mxu0 %v607
      %630 = vmatmul.f32.gmra.mxu0 %v612
      %v631 = vpop.f32.mrf.mxu0
      %v632 = vadd.f32 0.0, %v631
      %633 = vdwg.mxu0
      %634 = vmatpush.msra.mxu0 0.0
      %635 = vmatpush.msra.mxu0 0.0
      %636 = vmatpush.msra.mxu0 0.0
      %637 = vmatpush.msra.mxu0 0.0
      %638 = vmatpush.msra.mxu0 0.0
      %639 = vmatpush.msra.mxu0 0.0
      %640 = vmatpush.msra.mxu0 0.0
      %641 = vmatpush.msra.mxu0 0.0
      %642 = vmatpush.msra.mxu0 0.0
      %643 = vmatpush.msra.mxu0 0.0
      %644 = vmatpush.msra.mxu0 0.0
      %645 = vmatpush.msra.mxu0 0.0
      %646 = vmatpush.msra.mxu0 0.0
      %647 = vmatpush.msra.mxu0 0.0
      %648 = vmatpush.msra.mxu0 0.0
      %649 = vmatpush.msra.mxu0 %v608
      %650 = vmatmul.f32.gmra.mxu0 %v612
      %v651 = vpop.f32.mrf.mxu0
      %v652 = vadd.f32 0.0, %v651
      %653 = vdwg.mxu0
      %v654 = vadd.f32 %v596, %v632
      %v655 = vadd.f32 %v597, %v652
      %s656 = scalar_lea.vmem %s1, 64
      %v657 = vld [vmem:[%s656] sm:$0x1f]
      %658 = vrot.lane.b32.xlu0 %v202, 98
      %v659 = vpop.permute.xlu0 %658
      %660 = vrot.lane.b32.xlu0 %v203, 98
      %v661 = vpop.permute.xlu0 %660
      %662 = vrot.lane.b32.xlu0 %v204, 98
      %v663 = vpop.permute.xlu0 %662
      %vm664 = vcmask 801792
      %v665 = vsel %vm664, %v659, %v661
      %v666 = vsel %vm664, %v661, %v663
      %v670 = vsel %vm221, %v657, 0
      %672 = vmatpush.msra.mxu0 0.0
      %673 = vmatpush.msra.mxu0 0.0
      %674 = vmatpush.msra.mxu0 0.0
      %675 = vmatpush.msra.mxu0 0.0
      %676 = vmatpush.msra.mxu0 0.0
      %677 = vmatpush.msra.mxu0 0.0
      %678 = vmatpush.msra.mxu0 0.0
      %679 = vmatpush.msra.mxu0 0.0
      %680 = vmatpush.msra.mxu0 0.0
      %681 = vmatpush.msra.mxu0 0.0
      %682 = vmatpush.msra.mxu0 0.0
      %683 = vmatpush.msra.mxu0 0.0
      %684 = vmatpush.msra.mxu0 0.0
      %685 = vmatpush.msra.mxu0 0.0
      %686 = vmatpush.msra.mxu0 0.0
      %687 = vmatpush.msra.mxu0 %v665
      %688 = vmatmul.f32.gmra.mxu0 %v670
      %v689 = vpop.f32.mrf.mxu0
      %v690 = vadd.f32 0.0, %v689
      %691 = vdwg.mxu0
      %692 = vmatpush.msra.mxu0 0.0
      %693 = vmatpush.msra.mxu0 0.0
      %694 = vmatpush.msra.mxu0 0.0
      %695 = vmatpush.msra.mxu0 0.0
      %696 = vmatpush.msra.mxu0 0.0
      %697 = vmatpush.msra.mxu0 0.0
      %698 = vmatpush.msra.mxu0 0.0
      %699 = vmatpush.msra.mxu0 0.0
      %700 = vmatpush.msra.mxu0 0.0
      %701 = vmatpush.msra.mxu0 0.0
      %702 = vmatpush.msra.mxu0 0.0
      %703 = vmatpush.msra.mxu0 0.0
      %704 = vmatpush.msra.mxu0 0.0
      %705 = vmatpush.msra.mxu0 0.0
      %706 = vmatpush.msra.mxu0 0.0
      %707 = vmatpush.msra.mxu0 %v666
      %708 = vmatmul.f32.gmra.mxu0 %v670
      %v709 = vpop.f32.mrf.mxu0
      %v710 = vadd.f32 0.0, %v709
      %711 = vdwg.mxu0
      %v712 = vadd.f32 %v654, %v690
      %v713 = vadd.f32 %v655, %v710
      %715 = vset.pattern.permute.xlu0 0
      %716 = vperm.xlu0 %715, %v198
      %v717 = vpop.permute.xlu0 %716
      %v719 = vadd.f32 %v712, %v717
      %v720 = vadd.f32 %v713, %v717
      %721 = vst [vmem:[%s197] sm:$0x1f] %v719
      %722 = vst [vmem:[%s197 + $0x8] sm:$0x1f] %v720
      %v723 = vld [vmem:[%s197] sm:$0x1f]
      %v724 = vld [vmem:[%s197 + $0x8] sm:$0x1f]
      %v725 = vld [vmem:[%s3] sm:$0x3]
      %v727 = vperm.slane %v725, 0
      %v728 = vperm.slane %v725, 1
      %v731 = vmul.f32 %v723, %v727
      %v732 = vmul.f32 %v724, %v728
      %vm733 = vcmask 1044480
      %v734 = vsel %vm733, %v731, 0.0
      %v735 = vsel %vm733, %v732, 0.0
      %v736 = vadd.f32 %v734, %v735
      %737 = vadd.xlane.f32.xlu0 %v736
      %v738 = vpop.xlane.xlu0 %737
      %v739 = vmul.f32 %v731, %v723
      %v740 = vmul.f32 %v732, %v724
      %v741 = vsel %vm733, %v739, 0.0
      %v742 = vsel %vm733, %v740, 0.0
      %v743 = vadd.f32 %v741, %v742
      %744 = vadd.xlane.f32.xlu0 %v743
      %v745 = vpop.xlane.xlu0 %744
      %v746 = vmul.f32 %v738, 0.0069444445
      %v747 = vmul.f32 %v745, 0.0069444445
      %v748 = vmul.f32 %v746, %v746
      %v749 = vsub.f32 %v747, %v748
      %v750 = vmax.f32 %v749, 0.0
      %v751 = vadd.f32 %v750, 1e-05
      %v752 = vrsqrt.pop %v751
      %v753 = vmul.f32 %v752, %v751
      %v754 = vmul.f32 %v753, %v752
      %v755 = vmul.f32 0.5, %v754
      %v756 = vsub.f32 1.5, %v755
      %v757 = vmul.f32 %v752, %v756
      %vm758 = vweird.f32 %v751
      %vm759 = vweird.f32 %v752
      %vm760 = vmor %vm758, %vm759
      %v761 = vsel %vm760, %v752, %v757
      %v762 = vsub.f32 %v723, %v746
      %v763 = vsub.f32 %v724, %v746
      %v764 = vmul.f32 %v762, %v761
      %v765 = vmul.f32 %v763, %v761
      %v766 = vmax.f32 %v764, 0.0
      %v767 = vmax.f32 %v765, 0.0
      %768 = vst [vmem:[%s197] sm:$0x1f] %v766
      %769 = vst [vmem:[%s197 + $0x8] sm:$0x1f] %v767
      %p770 = scmp.lt.s32.totalorder %s15, 1
      %s771 = scalar_select %p770, %s15, 1
      %s772 = smul.addr %s771, 2
      %s773 = smul.addr %s772, 8
      %s774 = scalar_lea.vmem %s4, %s773
      // Predicated region
      $region37: #{tpu_custom_call.1} parent=35 // pred_check
        %p775 = pneg %p122
      $region38: #{tpu_custom_call.1} parent=35 // pred_check_branch
        %777 = sbr.rel (%p775) target = $region40
      $region39: #{tpu_custom_call.1} parent=35 // pred_region
        _
      $region40: #{tpu_custom_call.1} parent=35 // pred_fallthru
        _
    $region36: #{tpu_custom_call.1} parent=5 // pred_fallthru
      _
    %p778 = scmp.le.s32.totalorder 2, %s10
    // Predicated region
    $region41: #{tpu_custom_call.1} parent=5 // pred_check
      %p779 = pneg %p778
    $region42: #{tpu_custom_call.1} parent=5 // pred_check_branch
      %781 = sbr.rel (%p779) target = $region44
    $region43: #{tpu_custom_call.1} parent=5 // pred_region
      %s782 = ssub.s32 %s10, 2
      // Predicated region
      $region45: #{tpu_custom_call.1} parent=43 // pred_check
        %p783 = pneg %p128
      $region46: #{tpu_custom_call.1} parent=43 // pred_check_branch
        %785 = sbr.rel (%p783) target = $region48
      $region47: #{tpu_custom_call.1} parent=43 // pred_region
        %p786 = scmp.lt.s32.totalorder %s16, 1
        %s787 = scalar_select %p786, %s16, 1
        %s788 = smul.addr %s787, 2
        %s789 = smul.addr %s788, 8
        %s790 = scalar_lea.vmem %s4, %s789
      $region48: #{tpu_custom_call.1} parent=43 // pred_fallthru
        _
    $region44: #{tpu_custom_call.1} parent=5 // pred_fallthru
      _
  $region6: #{tpu_custom_call.1} parent=0 // loop_footer
    %s14 = sadd.s32 1, %s10
  $region7: #{tpu_custom_call.1} parent=0 // loop_footer_branch
    %9 = sbr.rel target = $region3
  $region8: #{tpu_custom_call.1} parent=0 // loop_exit
    _

</llo_original>
